<compile_context>
chip_gen: v5e
topology: v5e:2x2
jax: 0.10.0
libtpu: 0.0.40
codegen_flags: <defaults>
</compile_context>

<pallas_src>
import numpy as np
import jax
import jax.numpy as jnp
from jax.experimental import pallas as pl
from jax.experimental.pallas import tpu as pltpu


_VMEM_LIMIT_BYTES = 32 * 1024 * 1024   # safe on v5e (128 MiB phys) and v7x (64 MiB phys)


# ---------------------------------------------------------------------------
# Tile selection: largest HW tile that is a multiple of 128, divides HW, and
# keeps the double-buffered working set well under the per-generation VMEM
# budget (sized for v7x's smaller VMEM; fine on v5e/v6e).
# ---------------------------------------------------------------------------
def _pick_hw_tile(hw, c, itemsize, n_bufs=5, budget_bytes=10 * 1024 * 1024):
    if hw % 128 != 0:
        return hw                           # full-dim block (always legal)
    max_lanes = budget_bytes // (n_bufs * c * itemsize)
    t = (max_lanes // 128) * 128
    t = min(max(t, 128), hw)
    while hw % t:
        t -= 128
    return t


# ---------------------------------------------------------------------------
# Kernel A: radix-sum + global average pool + attention MLP (fused)
# ---------------------------------------------------------------------------
def _make_gap_atten_kernel(radix, channels, inv_hw):
    def kernel(x_ref, w1_ref, b1_ref, w2_ref, b2_ref, a_ref, acc_ref):
        # x_ref: (1, radix, Cr, T_HW)  input tile (native dtype)
        # w1_ref: (IC, Cr), b1_ref: (IC, 1)           -- fc1 (dense, transposed)
        # w2_ref: (radix*C, IC), b2_ref: (radix*C, 1) -- fc2 (dense, transposed,
        #          rows pre-permuted to rSoftMax radix-major order)
        # a_ref: (1, C, 1) attention output; acc_ref: (Cr, 1) f32 scratch
        t = pl.program_id(1)

        @pl.when(t == 0)
        def _init():
            acc_ref[...] = jnp.zeros_like(acc_ref)

        xb = x_ref[...]                              # (1, radix, Cr, T_HW)
        s = xb[0, 0].astype(jnp.float32)             # (Cr, T_HW)
        for r in range(1, radix):                    # static radix-sum
            s = s + xb[0, r].astype(jnp.float32)
        acc_ref[...] += jnp.sum(s, axis=-1, keepdims=True)   # (Cr, 1)

        @pl.when(t == pl.num_programs(1) - 1)
        def _finalize():
            gap = acc_ref[...] * inv_hw              # adaptive_avg_pool2d -> (Cr, 1)
            h1 = jnp.dot(w1_ref[...], gap,
                         preferred_element_type=jnp.float32) + b1_ref[...]   # (IC, 1)
            h1 = jnp.maximum(h1, 0.0)
            logits = jnp.dot(w2_ref[...], h1,
                             preferred_element_type=jnp.float32) + b2_ref[...]  # (R*C, 1)
            if radix > 1:
                # rSoftMax over the radix axis; only the r=0 slice is consumed
                # downstream (PyTorch zip truncation), so only that is emitted.
                chunks = [logits[r * channels:(r + 1) * channels, :]
                          for r in range(radix)]
                m = chunks[0]
                for ch in chunks[1:]:
                    m = jnp.maximum(m, ch)
                exps = [jnp.exp(ch - m) for ch in chunks]
                denom = exps[0]
                for e in exps[1:]:
                    denom = denom + e
                a = exps[0] * pl.reciprocal(denom, approx=True)   # (C, 1)
            else:
                a = pl.reciprocal(1.0 + jnp.exp(-logits), approx=True)  # sigmoid
            a_ref[...] = a[None]                     # (1, C, 1)
    return kernel


# ---------------------------------------------------------------------------
# Kernel B: per-channel attention scaling, tiled over (B, HW)
# ---------------------------------------------------------------------------
def _scale_kernel(x_ref, a_ref, o_ref):
    # x: (1, C, T_HW); a: (1, C, 1) f32; o: (1, C, T_HW) in x's dtype
    o_ref[...] = (x_ref[...].astype(jnp.float32) * a_ref[...]).astype(o_ref.dtype)


# ---------------------------------------------------------------------------
# One-time parameter preparation (hoisted out of the per-call path):
# grouped 1x1 convs -> dense transposed matrices, fc2 rows permuted to the
# rSoftMax radix-major order.
# ---------------------------------------------------------------------------
def prepare_split_attention_params(params, *, radix, cardinality):
    w1, b1, w2, b2 = (np.asarray(p, dtype=np.float32) for p in params)
    IC = w1.shape[0]
    Cr = w1.shape[1] * cardinality
    RC = w2.shape[0]
    channels = RC // radix
    k = channels // cardinality

    w1t = np.zeros((IC, Cr), np.float32)             # (IC, Cr) block-diagonal
    opg1, cpg1 = IC // cardinality, Cr // cardinality
    for g in range(cardinality):
        w1t[g * opg1:(g + 1) * opg1, g * cpg1:(g + 1) * cpg1] = \
            w1[g * opg1:(g + 1) * opg1, :, 0, 0]
    b1c = b1.reshape(IC, 1)

    w2t = np.zeros((RC, IC), np.float32)             # (RC, IC) block-diagonal
    opg2, cpg2 = RC // cardinality, IC // cardinality
    for g in range(cardinality):
        w2t[g * opg2:(g + 1) * opg2, g * cpg2:(g + 1) * cpg2] = \
            w2[g * opg2:(g + 1) * opg2, :, 0, 0]

    # rSoftMax permutation: new row r*C + c*k + j <- old row c*radix*k + r*k + j
    perm = np.empty(RC, np.int64)
    for r in range(radix):
        for c in range(cardinality):
            for j in range(k):
                perm[r * channels + c * k + j] = c * radix * k + r * k + j
    w2tp = w2t[perm]
    b2cp = b2[perm].reshape(RC, 1)

    return (jnp.asarray(w1t), jnp.asarray(b1c), jnp.asarray(w2tp), jnp.asarray(b2cp))


# ---------------------------------------------------------------------------
# Forward
# ---------------------------------------------------------------------------
def split_attention_forward(x, prepped, *, radix, cardinality, hw_tile=None):
    del cardinality  # group structure already folded into the prepared weights
    B, C, H, W = x.shape
    Cr = C // radix
    HW = H * W
    w1t, b1c, w2t, b2c = prepped
    IC = int(w1t.shape[0])
    RC = int(w2t.shape[0])
    assert RC == radix * C, "fc2 output width must equal channels * radix"

    T = hw_tile if hw_tile is not None else _pick_hw_tile(HW, C, x.dtype.itemsize)
    assert HW % T == 0 and (T % 128 == 0 or T == HW), "bad HW tile"
    n_hw = HW // T
    inv_hw = 1.0 / float(HW)

    # --- Kernel A: gap + attention MLP (fused) ---
    atten = pl.pallas_call(
        _make_gap_atten_kernel(radix, C, inv_hw),
        out_shape=jax.ShapeDtypeStruct((B, C, 1), jnp.float32),
        grid=(B, n_hw),
        in_specs=[
            pl.BlockSpec((1, radix, Cr, T), lambda b, t: (b, 0, 0, t)),
            pl.BlockSpec((IC, Cr), lambda b, t: (0, 0)),
            pl.BlockSpec((IC, 1), lambda b, t: (0, 0)),
            pl.BlockSpec((RC, IC), lambda b, t: (0, 0)),
            pl.BlockSpec((RC, 1), lambda b, t: (0, 0)),
        ],
        out_specs=pl.BlockSpec((1, C, 1), lambda b, t: (b, 0, 0)),
        scratch_shapes=[pltpu.VMEM((Cr, 1), jnp.float32)],
        compiler_params=pltpu.CompilerParams(
            dimension_semantics=("parallel", "arbitrary"),
            vmem_limit_bytes=_VMEM_LIMIT_BYTES),
    )(x.reshape(B, radix, Cr, HW), w1t, b1c, w2t, b2c)

    # --- Kernel B: per-channel scaling, pipelined over (B, HW) ---
    # (input_output_aliases={0: 0} could reuse x's buffer; skipped because the
    #  caller may still need x.)
    out = pl.pallas_call(
        _scale_kernel,
        out_shape=jax.ShapeDtypeStruct((B, C, HW), x.dtype),
        grid=(B, n_hw),
        in_specs=[
            pl.BlockSpec((1, C, T), lambda b, t: (b, 0, t)),
            pl.BlockSpec((1, C, 1), lambda b, t: (b, 0, 0)),
        ],
        out_specs=pl.BlockSpec((1, C, T), lambda b, t: (b, 0, t)),
        compiler_params=pltpu.CompilerParams(
            dimension_semantics=("parallel", "parallel"),
            vmem_limit_bytes=_VMEM_LIMIT_BYTES),
    )(x.reshape(B, C, HW), atten)

    return out.reshape(B, C, H, W)


# ---------------------------------------------------------------------------
# Pure-JAX reference mirroring the PyTorch module (for validation)
# ---------------------------------------------------------------------------
def split_attention_reference(x, params, *, radix, cardinality):
    w1, b1, w2, b2 = params
    B, rch, H, W = x.shape
    if radix > 1:
        splited = jnp.split(x, radix, axis=1)
        gap = splited[0]
        for s in splited[1:]:
            gap = gap + s
    else:
        splited = None
        gap = x
    gap = jnp.mean(gap, axis=(2, 3), keepdims=True)

    def grouped_conv1x1(inp, w, b, groups):
        cin, cout = inp.shape[1], w.shape[0]
        cpg, opg = cin // groups, cout // groups
        outs = []
        for g in range(groups):
            xg = inp[:, g * cpg:(g + 1) * cpg, 0, 0]
            wg = w[g * opg:(g + 1) * opg, :, 0, 0]
            outs.append(xg @ wg.T + b[g * opg:(g + 1) * opg])
        return jnp.concatenate(outs, axis=1)[:, :, None, None]

    gap = grouped_conv1x1(gap, w1, b1, cardinality)
    gap = jnp.maximum(gap, 0.0)
    atten = grouped_conv1x1(gap, w2, b2, cardinality)

    a = atten[:, :, 0, 0]
    if radix > 1:
        a = a.reshape(B, cardinality, radix, -1).transpose(0, 2, 1, 3)
        a = jax.nn.softmax(a, axis=1)
        a = a.reshape(B, -1)
    else:
        a = jax.nn.sigmoid(a)
    atten = a[:, :, None, None]

    if radix > 1:
        Cr = rch // radix
        n_chunks = atten.shape[1] // Cr
        attens = [atten[:, i * Cr:(i + 1) * Cr] for i in range(n_chunks)]
        out = jnp.concatenate([att * sp for att, sp in zip(attens, splited)], axis=1)
    else:
        out = atten * x
    return out


# ---------------------------------------------------------------------------
if __name__ == "__main__":
    key = jax.random.PRNGKey(0)

    configs = [
        # multi-tile HW accumulation path (grid=(2,4) in kernel A)
        dict(batch=2, channels=16, radix=2, cardinality=2, spatial=32, hw_tile=256),
        # radix=1 sigmoid path, auto tile (full-HW block)
        dict(batch=2, channels=16, radix=1, cardinality=2, spatial=16, hw_tile=None),
        # HW not a multiple of 128 -> full-dim block fallback
        dict(batch=2, channels=16, radix=2, cardinality=2, spatial=8, hw_tile=None),
    ]
    for cfg in configs:
        B, C = cfg["batch"], cfg["channels"]
        radix, card, S = cfg["radix"], cfg["cardinality"], cfg["spatial"]
        inter = max(C * radix // 4, 32)
        Cr = C // radix

        kx, k1, k2, k3, k4, key = jax.random.split(key, 6)
        x = jax.random.normal(kx, (B, C, S, S), jnp.float32)
        # synthetic parameters with the same shapes as the nn.Conv2d weights
        w1 = jax.random.normal(k1, (inter, Cr // card, 1, 1), jnp.float32) * 0.2
        b1 = jax.random.normal(k2, (inter,), jnp.float32) * 0.1
        w2 = jax.random.normal(k3, (C * radix, inter // card, 1, 1), jnp.float32) * 0.2
        b2 = jax.random.normal(k4, (C * radix,), jnp.float32) * 0.1
        params = (w1, b1, w2, b2)

        prepped = prepare_split_attention_params(params, radix=radix, cardinality=card)
        out = split_attention_forward(x, prepped, radix=radix, cardinality=card,
                                      hw_tile=cfg["hw_tile"])
        out = jax.block_until_ready(out)

        ref = split_attention_reference(x, params, radix=radix, cardinality=card)
        # tolerance allows for the EUP approximate reciprocal in softmax/sigmoid
        np.testing.assert_allclose(np.asarray(out), np.asarray(ref),
                                   rtol=5e-3, atol=5e-3)

    print("KERNEL_OK")
</pallas_src>

<mosaic_0001>
module attributes {stable_mosaic.version = 11 : i64} {
  func.func @kernel(%arg0: i32, %arg1: i32, %arg2: memref<1x2x8x256xf32, #tpu.memory_space<vmem>>, %arg3: memref<32x8xf32, #tpu.memory_space<vmem>>, %arg4: memref<32x1xf32, #tpu.memory_space<vmem>>, %arg5: memref<32x32xf32, #tpu.memory_space<vmem>>, %arg6: memref<32x1xf32, #tpu.memory_space<vmem>>, %arg7: memref<1x16x1xf32, #tpu.memory_space<vmem>>, %arg8: memref<8x1xf32, #tpu.memory_space<vmem>>) attributes {dimension_semantics = [#tpu.dimension_semantics<parallel>, #tpu.dimension_semantics<arbitrary>], iteration_bounds = array<i64: 2, 4>, scalar_prefetch = 0 : i64, scratch_operands = 1 : i64, tpu.core_type = #tpu.core_type<tc>, window_params = [{transform_indices = @transform_0, window_bounds = array<i64: 1, 2, 8, 256>}, {pipeline_mode = #tpu.pipeline_mode<synchronous>, transform_indices = @transform_1, window_bounds = array<i64: 32, 8>}, {pipeline_mode = #tpu.pipeline_mode<synchronous>, transform_indices = @transform_2, window_bounds = array<i64: 32, 1>}, {pipeline_mode = #tpu.pipeline_mode<synchronous>, transform_indices = @transform_3, window_bounds = array<i64: 32, 32>}, {pipeline_mode = #tpu.pipeline_mode<synchronous>, transform_indices = @transform_4, window_bounds = array<i64: 32, 1>}, {transform_indices = @transform_5, window_bounds = array<i64: 1, 16, 1>}]} {
    %c0_i32 = arith.constant 0 : i32
    %0 = arith.cmpi eq, %arg1, %c0_i32 : i32
    %1 = arith.extui %0 : i1 to i32
    %c0_i32_0 = arith.constant 0 : i32
    %2 = arith.cmpi ne, %1, %c0_i32_0 : i32
    scf.if %2 {
      %cst_9 = arith.constant 0.000000e+00 : f32
      %17 = vector.broadcast %cst_9 : f32 to vector<8x1xf32>
      %c0_10 = arith.constant 0 : index
      %c0_11 = arith.constant 0 : index
      %18 = vector.load %arg8[%c0_10, %c0_11] : memref<8x1xf32, #tpu.memory_space<vmem>>, vector<8x1xf32>
      tpu.vector_store %arg8[%c0_10, %c0_11], %17 {strides = array<i32>} : memref<8x1xf32, #tpu.memory_space<vmem>>, vector<8x1xf32>,
    } else {
    }
    %c0 = arith.constant 0 : index
    %c0_1 = arith.constant 0 : index
    %c0_2 = arith.constant 0 : index
    %c0_3 = arith.constant 0 : index
    %3 = vector.load %arg2[%c0, %c0_1, %c0_2, %c0_3] : memref<1x2x8x256xf32, #tpu.memory_space<vmem>>, vector<1x2x8x256xf32>
    %4 = vector.extract_strided_slice %3 {offsets = [0, 0, 0, 0], sizes = [1, 1, 8, 256], strides = [1, 1, 1, 1]} : vector<1x2x8x256xf32> to vector<1x1x8x256xf32>
    %5 = vector.shape_cast %4 : vector<1x1x8x256xf32> to vector<8x256xf32>
    %6 = vector.extract_strided_slice %3 {offsets = [0, 1, 0, 0], sizes = [1, 1, 8, 256], strides = [1, 1, 1, 1]} : vector<1x2x8x256xf32> to vector<1x1x8x256xf32>
    %7 = vector.shape_cast %6 : vector<1x1x8x256xf32> to vector<8x256xf32>
    %8 = arith.addf %5, %7 : vector<8x256xf32>
    %c0_4 = arith.constant 0 : index
    %c0_5 = arith.constant 0 : index
    %9 = vector.load %arg8[%c0_4, %c0_5] : memref<8x1xf32, #tpu.memory_space<vmem>>, vector<8x1xf32>
    %cst = arith.constant dense<0.000000e+00> : vector<8xf32>
    %10 = vector.multi_reduction <add>, %8, %cst [1] : vector<8x256xf32> to vector<8xf32>
    %11 = vector.shape_cast %10 : vector<8xf32> to vector<8x1xf32>
    %12 = arith.addf %9, %11 : vector<8x1xf32>
    %c0_6 = arith.constant 0 : index
    %c0_7 = arith.constant 0 : index
    %13 = vector.load %arg8[%c0_6, %c0_7] : memref<8x1xf32, #tpu.memory_space<vmem>>, vector<8x1xf32>
    tpu.vector_store %arg8[%c0_6, %c0_7], %12 {strides = array<i32>} : memref<8x1xf32, #tpu.memory_space<vmem>>, vector<8x1xf32>,
    %c3_i32 = arith.constant 3 : i32
    %14 = arith.cmpi eq, %arg1, %c3_i32 : i32
    %15 = arith.extui %14 : i1 to i32
    %c0_i32_8 = arith.constant 0 : i32
    %16 = arith.cmpi ne, %15, %c0_i32_8 : i32
    scf.if %16 {
      %c0_9 = arith.constant 0 : index
      %c0_10 = arith.constant 0 : index
      %17 = vector.load %arg8[%c0_9, %c0_10] : memref<8x1xf32, #tpu.memory_space<vmem>>, vector<8x1xf32>
      %cst_11 = arith.constant 9.765625E-4 : f32
      %18 = vector.broadcast %cst_11 : f32 to vector<8x1xf32>
      %19 = arith.mulf %17, %18 : vector<8x1xf32>
      %c0_12 = arith.constant 0 : index
      %c0_13 = arith.constant 0 : index
      %20 = vector.load %arg3[%c0_12, %c0_13] : memref<32x8xf32, #tpu.memory_space<vmem>>, vector<32x8xf32>
      %cst_14 = arith.constant dense<0.000000e+00> : vector<32x1xf32>
      %21 = tpu.matmul %20, %19, %cst_14 {dimension_numbers = #tpu.dot_dimension_numbers<[1], [0], [0], [1], [0, 0, 1, 1], [], []>} : vector<32x8xf32>, vector<8x1xf32>, vector<32x1xf32> -> vector<32x1xf32>
      %c0_15 = arith.constant 0 : index
      %c0_16 = arith.constant 0 : index
      %22 = vector.load %arg4[%c0_15, %c0_16] : memref<32x1xf32, #tpu.memory_space<vmem>>, vector<32x1xf32>
      %23 = arith.addf %21, %22 : vector<32x1xf32>
      %cst_17 = arith.constant 0.000000e+00 : f32
      %24 = vector.broadcast %cst_17 : f32 to vector<32x1xf32>
      %25 = arith.maximumf %23, %24 : vector<32x1xf32>
      %c0_18 = arith.constant 0 : index
      %c0_19 = arith.constant 0 : index
      %26 = vector.load %arg5[%c0_18, %c0_19] : memref<32x32xf32, #tpu.memory_space<vmem>>, vector<32x32xf32>
      %cst_20 = arith.constant dense<0.000000e+00> : vector<32x1xf32>
      %27 = tpu.matmul %26, %25, %cst_20 {dimension_numbers = #tpu.dot_dimension_numbers<[1], [0], [0], [1], [0, 0, 1, 1], [], []>} : vector<32x32xf32>, vector<32x1xf32>, vector<32x1xf32> -> vector<32x1xf32>
      %c0_21 = arith.constant 0 : index
      %c0_22 = arith.constant 0 : index
      %28 = vector.load %arg6[%c0_21, %c0_22] : memref<32x1xf32, #tpu.memory_space<vmem>>, vector<32x1xf32>
      %29 = arith.addf %27, %28 : vector<32x1xf32>
      %30 = vector.extract_strided_slice %29 {offsets = [0, 0], sizes = [16, 1], strides = [1, 1]} : vector<32x1xf32> to vector<16x1xf32>
      %31 = vector.extract_strided_slice %29 {offsets = [16, 0], sizes = [16, 1], strides = [1, 1]} : vector<32x1xf32> to vector<16x1xf32>
      %32 = arith.maximumf %30, %31 : vector<16x1xf32>
      %33 = arith.subf %30, %32 : vector<16x1xf32>
      %34 = math.exp %33 : vector<16x1xf32>
      %35 = arith.subf %31, %32 : vector<16x1xf32>
      %36 = math.exp %35 : vector<16x1xf32>
      %37 = arith.addf %34, %36 : vector<16x1xf32>
      %38 = tpu.reciprocal %37 {approx = true} : vector<16x1xf32> -> vector<16x1xf32>
      %39 = arith.mulf %34, %38 : vector<16x1xf32>
      %40 = vector.shape_cast %39 : vector<16x1xf32> to vector<1x16x1xf32>
      %c0_23 = arith.constant 0 : index
      %c0_24 = arith.constant 0 : index
      %c0_25 = arith.constant 0 : index
      %41 = vector.load %arg7[%c0_23, %c0_24, %c0_25] : memref<1x16x1xf32, #tpu.memory_space<vmem>>, vector<1x16x1xf32>
      tpu.vector_store %arg7[%c0_23, %c0_24, %c0_25], %40 {strides = array<i32>} : memref<1x16x1xf32, #tpu.memory_space<vmem>>, vector<1x16x1xf32>,
    } else {
    }
    return
  }
  func.func @transform_0(%arg0: i32, %arg1: i32) -> (i32, i32, i32, i32) {
    %c0_i32 = arith.constant 0 : i32
    %c0_i32_0 = arith.constant 0 : i32
    %c0_i32_1 = arith.constant 0 : i32
    return %arg0, %c0_i32, %c0_i32_0, %arg1 : i32, i32, i32, i32
  }
  func.func @transform_1(%arg0: i32, %arg1: i32) -> (i32, i32) {
    %c0_i32 = arith.constant 0 : i32
    %c0_i32_0 = arith.constant 0 : i32
    %c0_i32_1 = arith.constant 0 : i32
    return %c0_i32, %c0_i32_0 : i32, i32
  }
  func.func @transform_2(%arg0: i32, %arg1: i32) -> (i32, i32) {
    %c0_i32 = arith.constant 0 : i32
    %c0_i32_0 = arith.constant 0 : i32
    %c0_i32_1 = arith.constant 0 : i32
    return %c0_i32, %c0_i32_0 : i32, i32
  }
  func.func @transform_3(%arg0: i32, %arg1: i32) -> (i32, i32) {
    %c0_i32 = arith.constant 0 : i32
    %c0_i32_0 = arith.constant 0 : i32
    %c0_i32_1 = arith.constant 0 : i32
    return %c0_i32, %c0_i32_0 : i32, i32
  }
  func.func @transform_4(%arg0: i32, %arg1: i32) -> (i32, i32) {
    %c0_i32 = arith.constant 0 : i32
    %c0_i32_0 = arith.constant 0 : i32
    %c0_i32_1 = arith.constant 0 : i32
    return %c0_i32, %c0_i32_0 : i32, i32
  }
  func.func @transform_5(%arg0: i32, %arg1: i32) -> (i32, i32, i32) {
    %c0_i32 = arith.constant 0 : i32
    %c0_i32_0 = arith.constant 0 : i32
    %c0_i32_1 = arith.constant 0 : i32
    return %arg0, %c0_i32, %c0_i32_0 : i32, i32, i32
  }
}

</mosaic_0001>

<llo_original>
// kernel: tpu_custom_call.1
$region0: #{tpu_custom_call.1}
  #allocation0 [shape = 'u32[]', space=smem, size = 0x4, offset = 0x4, fixed_abs, tag = 'smem constant byte address 0x4 - core index']
  #allocation1 [shape = 'u32[72,128]{1,0:T(1,128)}', space=vmem, size = 0x9000, scoped, tag = 'internal scratch']
  #allocation2 [shape = 'f32[8,1]{1,0:T(8,128)}', space=vmem, size = 0x1000, scoped, tag = 'scratch operand']
  %s0 = inlined_call_operand.hbm [shape: f32[2,2,8,1024], index: 0, kind: input, shape index: {}]
  %s1 = inlined_call_operand.vmem [shape: f32[32,8], index: 1, kind: input, shape index: {}]
  %s2 = inlined_call_operand.vmem [shape: f32[32,1], index: 2, kind: input, shape index: {}]
  %s3 = inlined_call_operand.vmem [shape: f32[32,32], index: 3, kind: input, shape index: {}]
  %s4 = inlined_call_operand.vmem [shape: f32[32,1], index: 4, kind: input, shape index: {}]
  %s5 = inlined_call_operand.vmem [shape: f32[2,16,1], index: 5, kind: output, shape index: {}]
  %s6 = sld [smem:[#allocation0]]
  $region65: #{tpu_custom_call.1} parent=0
    _
  %s8 = ssub.s32 1, %s6
  %s9 = scalar_select 0, %s8, %s6
  $region1: #{tpu_custom_call.1} parent=0
    #allocation3 [shape = 'u8[32768]{0}', space=vmem, size = 0x8000, scoped, tag = 'input window, operand 0']
    #allocation4 [shape = 's32[2]{0}', space=sflag, size = 0x8, scoped, tag = 'scoped memory for tpu_custom_call.1']
    %10 = vsyncpa [#allocation4], 0
    %s11 = scalar_lea.sflag [#allocation4], 1
    %12 = vsyncpa %s11, 0
    loop: start=0, step=1, limit=10
    $region2: #{tpu_custom_call.1} parent=1 // loop_pre_header
      _
    $region3: #{tpu_custom_call.1} parent=1 // loop_header
      %s14 = sphi 0, %s18
      %p15 = scmp.ge.s32.totalorder %s14, 10
      %s21 = sphi 0, %s33
      %s22 = sphi 0, %s29
      %s23 = sphi 0, %s21
      %s24 = sphi 0, %s22
      %s25 = sphi 0, %s23
      %s26 = sphi 0, %s24
      %s38 = sphi 0, %s40
      %s41 = sphi 0, %s38
      %s42 = sphi 0, %s41
      %s58 = sphi 0, %s42
      %s62 = sphi 0, %s62
      %s64 = sphi 0, %s62
      %s65 = sphi 0, %s64
      %s79 = sphi 0, %s65
      %s83 = sphi 0, %s83
      %s85 = sphi 0, %s83
      %s86 = sphi 0, %s85
      %s100 = sphi 0, %s86
      %s104 = sphi 0, %s104
      %s106 = sphi 0, %s104
      %s107 = sphi 0, %s106
      %s121 = sphi 0, %s107
      %s125 = sphi 0, %s125
      %s127 = sphi 0, %s125
      %s128 = sphi 0, %s127
      %s142 = sphi 0, %s128
      %s148 = sphi 0, %s150
      %s151 = sphi 0, %s148
      %s152 = sphi 0, %s151
      %s168 = sphi 0, %s152
    $region4: #{tpu_custom_call.1} parent=1 // loop_header_branch
      %17 = sbr.rel (%p15) target = $region8
    $region5: #{tpu_custom_call.1} parent=1 // loop_body
      %s19 = ssub.s32 %s14, 1
      %s20 = ssub.s32 %s14, 2
      %s27 = sadd.s32 1, %s22
      %p28 = scmp.ge.s32.totalorder %s27, 4
      %s29 = scalar_select %p28, 0, %s27
      %s30 = sadd.s32 1, %s21
      %s31 = scalar_select %p28, %s30, %s21
      %p32 = scmp.ge.s32.totalorder %s31, 2
      %s33 = scalar_select %p32, 0, %s31
      %s34 = ssub.s32 %s21, %s33
      %s35 = ssub.s32 %s22, %s29
      %s36 = sor.u32 %s34, %s35
      %p37 = scmp.eq.s32.totalorder %s36, 0
      %s39 = sadd.s32 %s38, 1
      %s40 = scalar_select %p37, %s38, %s39
      %p43 = pneg %p37
      %p44 = scmp.eq.s32.totalorder %s14, 7
      %p45 = por %p43, %p44
      %p46 = scmp.ne.s32.totalorder %s38, %s41
      %p47 = scmp.eq.s32.totalorder %s14, 0
      %p48 = por %p46, %p47
      %p49 = scmp.ne.s32.totalorder %s38, %s41
      %p50 = scmp.eq.s32.totalorder %s19, 7
      %p51 = por %p49, %p50
      %p52 = scmp.ne.s32.totalorder %s41, %s42
      %p53 = scmp.eq.s32.totalorder %s19, 0
      %p54 = por %p52, %p53
      %p55 = scmp.ne.s32.totalorder %s41, %s42
      %p56 = scmp.eq.s32.totalorder %s20, 7
      %p57 = por %p55, %p56
      %p59 = scmp.ne.s32.totalorder %s42, %s58
      %p60 = scmp.eq.s32.totalorder %s20, 0
      %p61 = por %p59, %p60
      %s63 = sadd.s32 %s62, 1
      %p66 = scmp.eq.s32.totalorder %s14, 7
      %p67 = scmp.ne.s32.totalorder %s62, %s64
      %p68 = scmp.eq.s32.totalorder %s14, 0
      %p69 = por %p67, %p68
      %p70 = scmp.ne.s32.totalorder %s62, %s64
      %p71 = scmp.eq.s32.totalorder %s19, 7
      %p72 = por %p70, %p71
      %p73 = scmp.ne.s32.totalorder %s64, %s65
      %p74 = scmp.eq.s32.totalorder %s19, 0
      %p75 = por %p73, %p74
      %p76 = scmp.ne.s32.totalorder %s64, %s65
      %p77 = scmp.eq.s32.totalorder %s20, 7
      %p78 = por %p76, %p77
      %p80 = scmp.ne.s32.totalorder %s65, %s79
      %p81 = scmp.eq.s32.totalorder %s20, 0
      %p82 = por %p80, %p81
      %s84 = sadd.s32 %s83, 1
      %p87 = scmp.eq.s32.totalorder %s14, 7
      %p88 = scmp.ne.s32.totalorder %s83, %s85
      %p89 = scmp.eq.s32.totalorder %s14, 0
      %p90 = por %p88, %p89
      %p91 = scmp.ne.s32.totalorder %s83, %s85
      %p92 = scmp.eq.s32.totalorder %s19, 7
      %p93 = por %p91, %p92
      %p94 = scmp.ne.s32.totalorder %s85, %s86
      %p95 = scmp.eq.s32.totalorder %s19, 0
      %p96 = por %p94, %p95
      %p97 = scmp.ne.s32.totalorder %s85, %s86
      %p98 = scmp.eq.s32.totalorder %s20, 7
      %p99 = por %p97, %p98
      %p101 = scmp.ne.s32.totalorder %s86, %s100
      %p102 = scmp.eq.s32.totalorder %s20, 0
      %p103 = por %p101, %p102
      %s105 = sadd.s32 %s104, 1
      %p108 = scmp.eq.s32.totalorder %s14, 7
      %p109 = scmp.ne.s32.totalorder %s104, %s106
      %p110 = scmp.eq.s32.totalorder %s14, 0
      %p111 = por %p109, %p110
      %p112 = scmp.ne.s32.totalorder %s104, %s106
      %p113 = scmp.eq.s32.totalorder %s19, 7
      %p114 = por %p112, %p113
      %p115 = scmp.ne.s32.totalorder %s106, %s107
      %p116 = scmp.eq.s32.totalorder %s19, 0
      %p117 = por %p115, %p116
      %p118 = scmp.ne.s32.totalorder %s106, %s107
      %p119 = scmp.eq.s32.totalorder %s20, 7
      %p120 = por %p118, %p119
      %p122 = scmp.ne.s32.totalorder %s107, %s121
      %p123 = scmp.eq.s32.totalorder %s20, 0
      %p124 = por %p122, %p123
      %s126 = sadd.s32 %s125, 1
      %p129 = scmp.eq.s32.totalorder %s14, 7
      %p130 = scmp.ne.s32.totalorder %s125, %s127
      %p131 = scmp.eq.s32.totalorder %s14, 0
      %p132 = por %p130, %p131
      %p133 = scmp.ne.s32.totalorder %s125, %s127
      %p134 = scmp.eq.s32.totalorder %s19, 7
      %p135 = por %p133, %p134
      %p136 = scmp.ne.s32.totalorder %s127, %s128
      %p137 = scmp.eq.s32.totalorder %s19, 0
      %p138 = por %p136, %p137
      %p139 = scmp.ne.s32.totalorder %s127, %s128
      %p140 = scmp.eq.s32.totalorder %s20, 7
      %p141 = por %p139, %p140
      %p143 = scmp.ne.s32.totalorder %s128, %s142
      %p144 = scmp.eq.s32.totalorder %s20, 0
      %p145 = por %p143, %p144
      %s146 = ssub.s32 %s21, %s33
      %p147 = scmp.eq.s32.totalorder %s146, 0
      %s149 = sadd.s32 %s148, 1
      %s150 = scalar_select %p147, %s148, %s149
      %p153 = pneg %p147
      %p154 = scmp.eq.s32.totalorder %s14, 7
      %p155 = por %p153, %p154
      %p156 = scmp.ne.s32.totalorder %s148, %s151
      %p157 = scmp.eq.s32.totalorder %s14, 0
      %p158 = por %p156, %p157
      %p159 = scmp.ne.s32.totalorder %s148, %s151
      %p160 = scmp.eq.s32.totalorder %s19, 7
      %p161 = por %p159, %p160
      %p162 = scmp.ne.s32.totalorder %s151, %s152
      %p163 = scmp.eq.s32.totalorder %s19, 0
      %p164 = por %p162, %p163
      %p165 = scmp.ne.s32.totalorder %s151, %s152
      %p166 = scmp.eq.s32.totalorder %s20, 7
      %p167 = por %p165, %p166
      %p169 = scmp.ne.s32.totalorder %s152, %s168
      %p170 = scmp.eq.s32.totalorder %s20, 0
      %p171 = por %p169, %p170
      %p172 = scmp.le.s32.totalorder 1, %s14
      %p173 = scmp.lt.s32.totalorder %s14, 9
      %p174 = pnand %p172, %p173
      %p175 = pneg %p174
      // Predicated region
      $region9: #{tpu_custom_call.1} parent=5 // pred_check
        _
      $region10: #{tpu_custom_call.1} parent=5 // pred_check_branch
        %177 = sbr.rel (%p174) target = $region12
      $region11: #{tpu_custom_call.1} parent=5 // pred_region
        %s178 = ssub.s32 %s14, 1
        // Predicated region
        $region13: #{tpu_custom_call.1} parent=11 // pred_check
          %p179 = pneg %p75
        $region14: #{tpu_custom_call.1} parent=11 // pred_check_branch
          %181 = sbr.rel (%p179) target = $region16
        $region15: #{tpu_custom_call.1} parent=11 // pred_region
          _
        $region16: #{tpu_custom_call.1} parent=11 // pred_fallthru
          _
        // Predicated region
        $region17: #{tpu_custom_call.1} parent=11 // pred_check
          %p182 = pneg %p96
        $region18: #{tpu_custom_call.1} parent=11 // pred_check_branch
          %184 = sbr.rel (%p182) target = $region20
        $region19: #{tpu_custom_call.1} parent=11 // pred_region
          _
        $region20: #{tpu_custom_call.1} parent=11 // pred_fallthru
          _
        // Predicated region
        $region21: #{tpu_custom_call.1} parent=11 // pred_check
          %p185 = pneg %p117
        $region22: #{tpu_custom_call.1} parent=11 // pred_check_branch
          %187 = sbr.rel (%p185) target = $region24
        $region23: #{tpu_custom_call.1} parent=11 // pred_region
          _
        $region24: #{tpu_custom_call.1} parent=11 // pred_fallthru
          _
        // Predicated region
        $region25: #{tpu_custom_call.1} parent=11 // pred_check
          %p188 = pneg %p138
        $region26: #{tpu_custom_call.1} parent=11 // pred_check_branch
          %190 = sbr.rel (%p188) target = $region28
        $region27: #{tpu_custom_call.1} parent=11 // pred_region
          _
        $region28: #{tpu_custom_call.1} parent=11 // pred_fallthru
          _
      $region12: #{tpu_custom_call.1} parent=5 // pred_fallthru
        _
      %p191 = scmp.lt.s32.totalorder %s14, 8
      // Predicated region
      $region29: #{tpu_custom_call.1} parent=5 // pred_check
        %p192 = pneg %p191
      $region30: #{tpu_custom_call.1} parent=5 // pred_check_branch
        %194 = sbr.rel (%p192) target = $region32
      $region31: #{tpu_custom_call.1} parent=5 // pred_region
        // Predicated region
        $region33: #{tpu_custom_call.1} parent=31 // pred_check
          %p195 = pneg %p48
        $region34: #{tpu_custom_call.1} parent=31 // pred_check_branch
          %197 = sbr.rel (%p195) target = $region36
        $region35: #{tpu_custom_call.1} parent=31 // pred_region
          %s198 = sand.u32 %s38, 1
          %s199 = scalar_lea.sflag [#allocation4], %s198
          %s200 = sand.u32 %s38, 1
          %s201 = smul.addr %s200, 32
          %s202 = scalar_lea.vmem [#allocation3], %s201
          %s203 = smul.u32 2, %s22
          %205 = vsyncadd %s199, 0
          %s206 = smul.addr %s21, 16
          %s207 = sadd.s32 %s203, %s206
          %s208 = smul.addr %s207, 8
          %s209 = scalar_lea.hbm %s0, %s208
          %s210 = sshll.u32 %s209, 4
          %s211 = int_to_ptr.hbm [resolvable:$true] %s210
          %s212 = sshll.u32 %s202, 4
          %s213 = int_to_ptr.vmem [resolvable:$true] %s212
          %218 = dma.hbm_to_vmem [thread:$0]  %s211, 512, %s213, %s199, 1024, 256, 16
        $region36: #{tpu_custom_call.1} parent=31 // pred_fallthru
          _
      $region32: #{tpu_custom_call.1} parent=5 // pred_fallthru
        _
      %p219 = scmp.le.s32.totalorder 1, %s14
      %p220 = scmp.lt.s32.totalorder %s14, 9
      %p221 = pnand %p219, %p220
      %p222 = pneg %p221
      // Predicated region
      $region37: #{tpu_custom_call.1} parent=5 // pred_check
        _
      $region38: #{tpu_custom_call.1} parent=5 // pred_check_branch
        %224 = sbr.rel (%p221) target = $region40
      $region39: #{tpu_custom_call.1} parent=5 // pred_region
        %s225 = ssub.s32 %s14, 1
        %s226 = sand.u32 %s41, 1
        %s227 = scalar_lea.sflag [#allocation4], %s226
        %s228 = sand.u32 %s41, 1
        %s229 = smul.addr %s228, 32
        %s230 = scalar_lea.vmem [#allocation3], %s229
        // Predicated region
        $region41: #{tpu_custom_call.1} parent=39 // pred_check
          %p231 = pneg %p54
        $region42: #{tpu_custom_call.1} parent=39 // pred_check_branch
          %233 = sbr.rel (%p231) target = $region44
        $region43: #{tpu_custom_call.1} parent=39 // pred_region
          %235 = dma.done %s227, 512
        $region44: #{tpu_custom_call.1} parent=39 // pred_fallthru
          _
        %s236 = sand.u32 %s41, 1
        %s237 = scalar_lea.sflag [#allocation4], %s236
        %s238 = sand.u32 %s41, 1
        %s239 = smul.addr %s238, 32
        %s240 = scalar_lea.vmem [#allocation3], %s239
        %p241 = pneg %p54
        %p242 = pneg %p51
        %p243 = pneg %p75
        %p244 = pneg %p72
        %p245 = pneg %p96
        %p246 = pneg %p93
        %p247 = pneg %p117
        %p248 = pneg %p114
        %p249 = pneg %p138
        %p250 = pneg %p135
        %p251 = pneg %p164
        %p252 = pneg %p161
        %p253 = scmp.lt.s32.totalorder %s23, 1
        %s254 = scalar_select %p253, %s23, 1
        %s255 = smul.addr %s254, 2
        %s256 = smul.addr %s255, 8
        %s257 = scalar_lea.vmem %s5, %s256
        %s258 = smul.u32 2, %s24
        %p259 = scmp.lt.s32.totalorder %s23, 1
        %s260 = scalar_select %p259, %s23, 1
        %s261 = smul.addr %s260, 2
        %s262 = smul.addr %s261, 8
        %s263 = scalar_lea.vmem %s5, %s262
        %p264 = scmp.eq.s32.totalorder %s24, 0
        // Predicated region
        $region45: #{tpu_custom_call.1} parent=39 // pred_check
          %p265 = pneg %p264
        $region46: #{tpu_custom_call.1} parent=39 // pred_check_branch
          %267 = sbr.rel (%p265) target = $region48
        $region47: #{tpu_custom_call.1} parent=39 // pred_region
          %vm268 = vcmask 7168
          %269 = vst.msk [vmem:[#allocation2] sm:$0xff] %vm268, 0.0
        $region48: #{tpu_custom_call.1} parent=39 // pred_fallthru
          _
        %v270 = vld [vmem:[%s230] sm:$0xff]
        %v271 = vld [vmem:[%s230 + $0x8] sm:$0xff]
        %v272 = vld [vmem:[%s230 + $0x10] sm:$0xff]
        %v273 = vld [vmem:[%s230 + $0x18] sm:$0xff]
        %v274 = vadd.f32 %v270, %v272
        %v275 = vadd.f32 %v271, %v273
        %v276 = vld [vmem:[#allocation2] sm:$0xff]
        %v277 = vadd.f32 %v274, %v275
        %278 = vadd.xlane.f32.xlu0 %v277
        %v279 = vpop.xlane.xlu0 %278
        %v280 = vadd.f32 %v276, %v279
        %vm281 = vcmask 7168
        %282 = vst.msk [vmem:[#allocation2] sm:$0xff] %vm281, %v280
        %p283 = scmp.eq.s32.totalorder %s24, 3
        // Predicated region
        $region49: #{tpu_custom_call.1} parent=39 // pred_check
          %p284 = pneg %p283
        $region50: #{tpu_custom_call.1} parent=39 // pred_check_branch
          %286 = sbr.rel (%p284) target = $region52
        $region51: #{tpu_custom_call.1} parent=39 // pred_region
          %v287 = vld [vmem:[#allocation2] sm:$0xff]
          %v288 = vmul.f32 %v287, 0.0009765625
          %v289 = vld [vmem:[%s1] sm:$0xff]
          %v290 = vld [vmem:[%s1 + $0x8] sm:$0xff]
          %v291 = vld [vmem:[%s1 + $0x10] sm:$0xff]
          %v292 = vld [vmem:[%s1 + $0x18] sm:$0xff]
          %v293 = vld [vmem:[%s2] sm:$0xff]
          %v294 = vld [vmem:[%s2 + $0x8] sm:$0xff]
          %v295 = vld [vmem:[%s2 + $0x10] sm:$0xff]
          %v296 = vld [vmem:[%s2 + $0x18] sm:$0xff]
          %vm297 = vcmask 64512
          %v299 = vsel %vm297, %v289, 0
          %v302 = vsel %vm297, %v290, 0
          %v305 = vsel %vm297, %v291, 0
          %v308 = vsel %vm297, %v292, 0
          %310 = vmatpush.msra.mxu0 0.0
          %311 = vmatpush.msra.mxu0 0.0
          %312 = vmatpush.msra.mxu0 0.0
          %313 = vmatpush.msra.mxu0 0.0
          %314 = vmatpush.msra.mxu0 0.0
          %315 = vmatpush.msra.mxu0 0.0
          %316 = vmatpush.msra.mxu0 0.0
          %317 = vmatpush.msra.mxu0 0.0
          %318 = vmatpush.msra.mxu0 0.0
          %319 = vmatpush.msra.mxu0 0.0
          %320 = vmatpush.msra.mxu0 0.0
          %321 = vmatpush.msra.mxu0 0.0
          %322 = vmatpush.msra.mxu0 0.0
          %323 = vmatpush.msra.mxu0 0.0
          %324 = vmatpush.msra.mxu0 0.0
          %325 = vmatpush.msra.mxu0 %v288
          %326 = vmatmul.f32.gmra.mxu0 %v299
          %v327 = vpop.f32.mrf.mxu0
          %v328 = vadd.f32 %v293, %v327
          %329 = vmatmul.f32.gmra.mxu0 %v302
          %v330 = vpop.f32.mrf.mxu0
          %v331 = vadd.f32 %v294, %v330
          %332 = vmatmul.f32.gmra.mxu0 %v305
          %v333 = vpop.f32.mrf.mxu0
          %v334 = vadd.f32 %v295, %v333
          %335 = vmatmul.f32.gmra.mxu0 %v308
          %v336 = vpop.f32.mrf.mxu0
          %v337 = vadd.f32 %v296, %v336
          %338 = vdwg.mxu0
          %v339 = vmax.f32 %v328, 0.0
          %v340 = vmax.f32 %v331, 0.0
          %v341 = vmax.f32 %v334, 0.0
          %v342 = vmax.f32 %v337, 0.0
          %v343 = vld [vmem:[%s3] sm:$0xff]
          %v344 = vld [vmem:[%s3 + $0x8] sm:$0xff]
          %v345 = vld [vmem:[%s3 + $0x10] sm:$0xff]
          %v346 = vld [vmem:[%s3 + $0x18] sm:$0xff]
          %v347 = vld [vmem:[%s4] sm:$0xff]
          %v348 = vld [vmem:[%s4 + $0x8] sm:$0xff]
          %v349 = vld [vmem:[%s4 + $0x10] sm:$0xff]
          %v350 = vld [vmem:[%s4 + $0x18] sm:$0xff]
          %vm351 = vcmask 261120
          %v353 = vsel %vm351, %v343, 0
          %v356 = vsel %vm351, %v344, 0
          %v359 = vsel %vm351, %v345, 0
          %v362 = vsel %vm351, %v346, 0
          %364 = vmatpush.msra.mxu0 0.0
          %365 = vmatpush.msra.mxu0 0.0
          %366 = vmatpush.msra.mxu0 0.0
          %367 = vmatpush.msra.mxu0 0.0
          %368 = vmatpush.msra.mxu0 0.0
          %369 = vmatpush.msra.mxu0 0.0
          %370 = vmatpush.msra.mxu0 0.0
          %371 = vmatpush.msra.mxu0 0.0
          %372 = vmatpush.msra.mxu0 0.0
          %373 = vmatpush.msra.mxu0 0.0
          %374 = vmatpush.msra.mxu0 0.0
          %375 = vmatpush.msra.mxu0 0.0
          %376 = vmatpush.msra.mxu0 %v342
          %377 = vmatpush.msra.mxu0 %v341
          %378 = vmatpush.msra.mxu0 %v340
          %379 = vmatpush.msra.mxu0 %v339
          %380 = vmatmul.f32.gmra.mxu0 %v353
          %v381 = vpop.f32.mrf.mxu0
          %v382 = vadd.f32 %v347, %v381
          %383 = vmatmul.f32.gmra.mxu0 %v356
          %v384 = vpop.f32.mrf.mxu0
          %v385 = vadd.f32 %v348, %v384
          %386 = vmatmul.f32.gmra.mxu0 %v359
          %v387 = vpop.f32.mrf.mxu0
          %v388 = vadd.f32 %v349, %v387
          %389 = vmatmul.f32.gmra.mxu0 %v362
          %v390 = vpop.f32.mrf.mxu0
          %v391 = vadd.f32 %v350, %v390
          %392 = vdwg.mxu0
          %v393 = vmax.f32 %v382, %v388
          %v394 = vmax.f32 %v385, %v391
          %v395 = vsub.f32 %v382, %v393
          %v396 = vsub.f32 %v385, %v394
          %v397 = vmul.f32 %v395, 1.442695
          %v398 = vpow.pop %v397
          %v399 = vmul.f32 %v396, 1.442695
          %v400 = vpow.pop %v399
          %v401 = vsub.f32 %v388, %v393
          %v402 = vsub.f32 %v391, %v394
          %v403 = vmul.f32 %v401, 1.442695
          %v404 = vpow.pop %v403
          %v405 = vmul.f32 %v402, 1.442695
          %v406 = vpow.pop %v405
          %v407 = vadd.f32 %v398, %v404
          %v408 = vadd.f32 %v400, %v406
          %v409 = vrcp.pop %v407
          %v410 = vrcp.pop %v408
          %v411 = vmul.f32 %v398, %v409
          %v412 = vmul.f32 %v400, %v410
          %413 = vst.msk [vmem:[%s263] sm:$0xff] %vm281, %v411
          %414 = vst.msk [vmem:[%s263 + $0x8] sm:$0xff] %vm281, %v412
        $region52: #{tpu_custom_call.1} parent=39 // pred_fallthru
          _
        %p415 = scmp.lt.s32.totalorder %s23, 1
        %s416 = scalar_select %p415, %s23, 1
        %s417 = smul.addr %s416, 2
        %s418 = smul.addr %s417, 8
        %s419 = scalar_lea.vmem %s5, %s418
        // Predicated region
        $region53: #{tpu_custom_call.1} parent=39 // pred_check
          %p420 = pneg %p161
        $region54: #{tpu_custom_call.1} parent=39 // pred_check_branch
          %422 = sbr.rel (%p420) target = $region56
        $region55: #{tpu_custom_call.1} parent=39 // pred_region
          _
        $region56: #{tpu_custom_call.1} parent=39 // pred_fallthru
          _
      $region40: #{tpu_custom_call.1} parent=5 // pred_fallthru
        _
      %p423 = scmp.le.s32.totalorder 2, %s14
      // Predicated region
      $region57: #{tpu_custom_call.1} parent=5 // pred_check
        %p424 = pneg %p423
      $region58: #{tpu_custom_call.1} parent=5 // pred_check_branch
        %426 = sbr.rel (%p424) target = $region60
      $region59: #{tpu_custom_call.1} parent=5 // pred_region
        %s427 = ssub.s32 %s14, 2
        // Predicated region
        $region61: #{tpu_custom_call.1} parent=59 // pred_check
          %p428 = pneg %p167
        $region62: #{tpu_custom_call.1} parent=59 // pred_check_branch
          %430 = sbr.rel (%p428) target = $region64
        $region63: #{tpu_custom_call.1} parent=59 // pred_region
          %p431 = scmp.lt.s32.totalorder %s25, 1
          %s432 = scalar_select %p431, %s25, 1
          %s433 = smul.addr %s432, 2
          %s434 = smul.addr %s433, 8
          %s435 = scalar_lea.vmem %s5, %s434
        $region64: #{tpu_custom_call.1} parent=59 // pred_fallthru
          _
      $region60: #{tpu_custom_call.1} parent=5 // pred_fallthru
        _
    $region6: #{tpu_custom_call.1} parent=1 // loop_footer
      %s18 = sadd.s32 1, %s14
    $region7: #{tpu_custom_call.1} parent=1 // loop_footer_branch
      %13 = sbr.rel target = $region3
    $region8: #{tpu_custom_call.1} parent=1 // loop_exit
      _
    %436 = vsyncpa [#allocation4], 1
    %s437 = scalar_lea.sflag [#allocation4], 1
    %438 = vsyncpa %s437, 1

</llo_original>
